<compile_context>
chip_gen: v5e
topology: v5e:2x2
jax: 0.10.0
libtpu: 0.0.40
codegen_flags: <defaults>
</compile_context>

<pallas_src>
import functools
import math

import jax
import jax.numpy as jnp
from jax.experimental import pallas as pl
from jax.experimental.pallas import tpu as pltpu

_INV_SQRT2 = 1.0 / math.sqrt(2.0)


def _round_up(x, m):
    return ((x + m - 1) // m) * m


def _mlm_head_kernel(x_ref, w1_ref, b1_ref, g_ref, beta_ref, w2_ref, b2_ref,
                     o_ref, h_ref, *, eps):
    # Transform (dense -> GELU -> LayerNorm) is computed once per row tile
    # (vocab axis j is the innermost grid axis) and cached in VMEM scratch.
    @pl.when(pl.program_id(1) == 0)
    def _():
        x = x_ref[...].astype(jnp.float32)

        # Dense: hidden -> hidden
        h = jnp.dot(x, w1_ref[...], preferred_element_type=jnp.float32) + b1_ref[...]

        # Exact GELU (erf-based; matches torch.nn.functional.gelu default / ACT2FN["gelu"])
        h = 0.5 * h * (1.0 + jax.lax.erf(h * _INV_SQRT2))

        # LayerNorm over the hidden axis
        mean = jnp.mean(h, axis=-1, keepdims=True)
        cen = h - mean
        var = jnp.mean(cen * cen, axis=-1, keepdims=True)
        h = cen * jax.lax.rsqrt(var + eps)
        h_ref[...] = h * g_ref[...] + beta_ref[...]

    # Decoder: hidden -> vocab tile, plus (tied) bias tile
    y = jnp.dot(h_ref[...], w2_ref[...], preferred_element_type=jnp.float32) + b2_ref[...]
    o_ref[...] = y.astype(o_ref.dtype)


def interation_only_mlm_head(sequence_output, params, *, eps=1e-12,
                             tile_rows=256, tile_vocab=2048):
    """sequence_output: [B, S, H]. Returns prediction_scores [B, S, V]."""
    B, S, H = sequence_output.shape
    V = params["w2"].shape[1]
    n_rows = B * S

    # Clamp tiles to the (padded) problem size, keeping (8, 128) alignment.
    tile_rows = _round_up(min(tile_rows, _round_up(n_rows, 8)), 8)
    tile_vocab = _round_up(min(tile_vocab, _round_up(V, 128)), 128)
    rows_p = _round_up(n_rows, tile_rows)
    v_p = _round_up(V, tile_vocab)

    x = sequence_output.reshape(n_rows, H)
    if rows_p != n_rows:
        x = jnp.pad(x, ((0, rows_p - n_rows), (0, 0)))

    w2 = params["w2"]
    b2 = params["b2"].reshape(1, V)
    if v_p != V:
        w2 = jnp.pad(w2, ((0, 0), (0, v_p - V)))
        b2 = jnp.pad(b2, ((0, 0), (0, v_p - V)))

    # biases / LN params presented as (1, H) 2-D slabs for the kernel
    b1 = params["b1"].reshape(1, H)
    gamma = params["gamma"].reshape(1, H)
    beta = params["beta"].reshape(1, H)

    kernel = functools.partial(_mlm_head_kernel, eps=eps)

    # Rough per-step VMEM budget: double-buffered inputs/outputs + f32 h scratch.
    # Raise above the v5e (16 MiB) / v6e (32 MiB) scoped defaults, but cap at 64 MiB
    # so the same setting remains valid on v7x (64 MiB physical per TensorCore).
    itemsize = jnp.dtype(sequence_output.dtype).itemsize
    est = 2 * itemsize * (tile_rows * H + H * H + 3 * H
                          + H * tile_vocab + tile_vocab + tile_rows * tile_vocab)
    est += 4 * tile_rows * H  # f32 scratch (single buffered)
    vmem_limit = int(min(64 * 1024 * 1024, max(32 * 1024 * 1024, 2 * est)))

    grid = (rows_p // tile_rows, v_p // tile_vocab)

    out = pl.pallas_call(
        kernel,
        out_shape=jax.ShapeDtypeStruct((rows_p, v_p), sequence_output.dtype),
        grid_spec=pltpu.PrefetchScalarGridSpec(
            num_scalar_prefetch=0,
            grid=grid,
            in_specs=[
                pl.BlockSpec((tile_rows, H), lambda i, j: (i, 0)),    # x row tile
                pl.BlockSpec((H, H), lambda i, j: (0, 0)),            # W1 (in, out)
                pl.BlockSpec((1, H), lambda i, j: (0, 0)),            # b1
                pl.BlockSpec((1, H), lambda i, j: (0, 0)),            # LN gamma
                pl.BlockSpec((1, H), lambda i, j: (0, 0)),            # LN beta
                pl.BlockSpec((H, tile_vocab), lambda i, j: (0, j)),   # W2 vocab tile
                pl.BlockSpec((1, tile_vocab), lambda i, j: (0, j)),   # b2 vocab tile
            ],
            out_specs=pl.BlockSpec((tile_rows, tile_vocab), lambda i, j: (i, j)),
            scratch_shapes=[pltpu.VMEM((tile_rows, H), jnp.float32)],  # cached h
        ),
        compiler_params=pltpu.CompilerParams(
            dimension_semantics=("parallel", "arbitrary"),
            vmem_limit_bytes=vmem_limit),
    )(x, params["w1"], b1, gamma, beta, w2, b2)

    # TODO(synk): for bf16 weight/activation streaming (v6e/v7x MXU peak), feed bf16
    # operands to both jnp.dot calls and loosen the f32 parity tolerance accordingly.
    out = out[:n_rows, :V]
    return out.reshape(B, S, V)


def _reference(sequence_output, params, eps=1e-12):
    x = sequence_output.astype(jnp.float32)
    h = x @ params["w1"] + params["b1"]
    h = 0.5 * h * (1.0 + jax.lax.erf(h / jnp.sqrt(2.0)))
    mean = h.mean(-1, keepdims=True)
    var = ((h - mean) ** 2).mean(-1, keepdims=True)
    h = (h - mean) * jax.lax.rsqrt(var + eps)
    h = h * params["gamma"] + params["beta"]
    return h @ params["w2"] + params["b2"]


def _make_params(key, H, V):
    k_w1, k_b1, k_w2 = jax.random.split(key, 3)
    return {
        "w1": jax.random.normal(k_w1, (H, H), dtype=jnp.float32) * 0.02,
        "b1": jax.random.normal(k_b1, (H,), dtype=jnp.float32) * 0.02,
        "gamma": jnp.ones((H,), dtype=jnp.float32),   # LayerNorm weight init
        "beta": jnp.zeros((H,), dtype=jnp.float32),   # LayerNorm bias init
        "w2": jax.random.normal(k_w2, (H, V), dtype=jnp.float32) * 0.02,
        "b2": jnp.zeros((V,), dtype=jnp.float32),     # decoder tied bias init (zeros)
    }


if __name__ == "__main__":
    eps = 1e-12
    key = jax.random.PRNGKey(0)
    k_x1, k_p1, k_x2, k_p2 = jax.random.split(key, 4)

    # Case 1: small config consistent with the module (hidden_size=128, vocab_size=256).
    B, S, H, V = 2, 8, 128, 256
    seq_out = jax.random.normal(k_x1, (B, S, H), dtype=jnp.float32)
    params = _make_params(k_p1, H, V)

    scores = interation_only_mlm_head(seq_out, params, eps=eps)
    scores = jax.block_until_ready(scores)
    ref = _reference(seq_out, params, eps=eps)
    assert scores.shape == (B, S, V)
    assert jnp.allclose(scores, ref, atol=1e-4, rtol=1e-4), "mismatch vs pure-JAX reference (case 1)"

    # Case 2: ragged shapes exercising the row/vocab padding path.
    B2, S2, H2, V2 = 2, 7, 128, 200
    seq_out2 = jax.random.normal(k_x2, (B2, S2, H2), dtype=jnp.float32)
    params2 = _make_params(k_p2, H2, V2)

    scores2 = interation_only_mlm_head(seq_out2, params2, eps=eps)
    scores2 = jax.block_until_ready(scores2)
    ref2 = _reference(seq_out2, params2, eps=eps)
    assert scores2.shape == (B2, S2, V2)
    assert jnp.allclose(scores2, ref2, atol=1e-4, rtol=1e-4), "mismatch vs pure-JAX reference (case 2)"

    print("KERNEL_OK")
</pallas_src>

<mosaic_0001>
module attributes {stable_mosaic.version = 11 : i64} {
  func.func @_mlm_head_kernel(%arg0: i32, %arg1: i32, %arg2: memref<16x128xf32, #tpu.memory_space<vmem>>, %arg3: memref<128x128xf32, #tpu.memory_space<vmem>>, %arg4: memref<1x128xf32, #tpu.memory_space<vmem>>, %arg5: memref<1x128xf32, #tpu.memory_space<vmem>>, %arg6: memref<1x128xf32, #tpu.memory_space<vmem>>, %arg7: memref<128x256xf32, #tpu.memory_space<vmem>>, %arg8: memref<1x256xf32, #tpu.memory_space<vmem>>, %arg9: memref<16x256xf32, #tpu.memory_space<vmem>>, %arg10: memref<16x128xf32, #tpu.memory_space<vmem>>) attributes {dimension_semantics = [#tpu.dimension_semantics<parallel>, #tpu.dimension_semantics<arbitrary>], iteration_bounds = array<i64: 1, 1>, scalar_prefetch = 0 : i64, scratch_operands = 1 : i64, tpu.core_type = #tpu.core_type<tc>, window_params = [{transform_indices = @transform_0, window_bounds = array<i64: 16, 128>}, {pipeline_mode = #tpu.pipeline_mode<synchronous>, transform_indices = @transform_1, window_bounds = array<i64: 128, 128>}, {pipeline_mode = #tpu.pipeline_mode<synchronous>, transform_indices = @transform_2, window_bounds = array<i64: 1, 128>}, {pipeline_mode = #tpu.pipeline_mode<synchronous>, transform_indices = @transform_3, window_bounds = array<i64: 1, 128>}, {pipeline_mode = #tpu.pipeline_mode<synchronous>, transform_indices = @transform_4, window_bounds = array<i64: 1, 128>}, {transform_indices = @transform_5, window_bounds = array<i64: 128, 256>}, {transform_indices = @transform_6, window_bounds = array<i64: 1, 256>}, {transform_indices = @transform_7, window_bounds = array<i64: 16, 256>}]} {
    %c0_i32 = arith.constant 0 : i32
    %0 = arith.cmpi eq, %arg1, %c0_i32 : i32
    %1 = arith.extui %0 : i1 to i32
    %c0_i32_0 = arith.constant 0 : i32
    %2 = arith.cmpi ne, %1, %c0_i32_0 : i32
    scf.if %2 {
      %c0_8 = arith.constant 0 : index
      %c0_9 = arith.constant 0 : index
      %10 = vector.load %arg2[%c0_8, %c0_9] : memref<16x128xf32, #tpu.memory_space<vmem>>, vector<16x128xf32>
      %c0_10 = arith.constant 0 : index
      %c0_11 = arith.constant 0 : index
      %11 = vector.load %arg3[%c0_10, %c0_11] : memref<128x128xf32, #tpu.memory_space<vmem>>, vector<128x128xf32>
      %cst_12 = arith.constant dense<0.000000e+00> : vector<16x128xf32>
      %12 = tpu.matmul %10, %11, %cst_12 {dimension_numbers = #tpu.dot_dimension_numbers<[1], [0], [0], [1], [0, 0, 1, 1], [], []>} : vector<16x128xf32>, vector<128x128xf32>, vector<16x128xf32> -> vector<16x128xf32>
      %c0_13 = arith.constant 0 : index
      %c0_14 = arith.constant 0 : index
      %13 = vector.load %arg4[%c0_13, %c0_14] : memref<1x128xf32, #tpu.memory_space<vmem>>, vector<1x128xf32>
      %14 = vector.broadcast %13 : vector<1x128xf32> to vector<16x128xf32>
      %15 = arith.addf %12, %14 : vector<16x128xf32>
      %cst_15 = arith.constant 5.000000e-01 : f32
      %16 = vector.broadcast %cst_15 : f32 to vector<16x128xf32>
      %17 = arith.mulf %16, %15 : vector<16x128xf32>
      %cst_16 = arith.constant 0.707106769 : f32
      %18 = vector.broadcast %cst_16 : f32 to vector<16x128xf32>
      %19 = arith.mulf %15, %18 : vector<16x128xf32>
      %20 = math.erf %19 : vector<16x128xf32>
      %cst_17 = arith.constant 1.000000e+00 : f32
      %21 = vector.broadcast %cst_17 : f32 to vector<16x128xf32>
      %22 = arith.addf %21, %20 : vector<16x128xf32>
      %23 = arith.mulf %17, %22 : vector<16x128xf32>
      %cst_18 = arith.constant dense<0.000000e+00> : vector<16xf32>
      %24 = vector.multi_reduction <add>, %23, %cst_18 [1] : vector<16x128xf32> to vector<16xf32>
      %25 = vector.shape_cast %24 : vector<16xf32> to vector<16x1xf32>
      %cst_19 = arith.constant 1.280000e+02 : f32
      %26 = vector.broadcast %cst_19 : f32 to vector<16x1xf32>
      %27 = arith.divf %25, %26 : vector<16x1xf32>
      %28 = vector.broadcast %27 : vector<16x1xf32> to vector<16x128xf32>
      %29 = arith.subf %23, %28 : vector<16x128xf32>
      %30 = arith.mulf %29, %29 : vector<16x128xf32>
      %cst_20 = arith.constant dense<0.000000e+00> : vector<16xf32>
      %31 = vector.multi_reduction <add>, %30, %cst_20 [1] : vector<16x128xf32> to vector<16xf32>
      %32 = vector.shape_cast %31 : vector<16xf32> to vector<16x1xf32>
      %cst_21 = arith.constant 1.280000e+02 : f32
      %33 = vector.broadcast %cst_21 : f32 to vector<16x1xf32>
      %34 = arith.divf %32, %33 : vector<16x1xf32>
      %cst_22 = arith.constant 9.99999996E-13 : f32
      %35 = vector.broadcast %cst_22 : f32 to vector<16x1xf32>
      %36 = arith.addf %34, %35 : vector<16x1xf32>
      %37 = math.rsqrt %36 : vector<16x1xf32>
      %38 = vector.broadcast %37 : vector<16x1xf32> to vector<16x128xf32>
      %39 = arith.mulf %29, %38 : vector<16x128xf32>
      %c0_23 = arith.constant 0 : index
      %c0_24 = arith.constant 0 : index
      %40 = vector.load %arg5[%c0_23, %c0_24] : memref<1x128xf32, #tpu.memory_space<vmem>>, vector<1x128xf32>
      %41 = vector.broadcast %40 : vector<1x128xf32> to vector<16x128xf32>
      %42 = arith.mulf %39, %41 : vector<16x128xf32>
      %c0_25 = arith.constant 0 : index
      %c0_26 = arith.constant 0 : index
      %43 = vector.load %arg6[%c0_25, %c0_26] : memref<1x128xf32, #tpu.memory_space<vmem>>, vector<1x128xf32>
      %44 = vector.broadcast %43 : vector<1x128xf32> to vector<16x128xf32>
      %45 = arith.addf %42, %44 : vector<16x128xf32>
      %c0_27 = arith.constant 0 : index
      %c0_28 = arith.constant 0 : index
      %46 = vector.load %arg10[%c0_27, %c0_28] : memref<16x128xf32, #tpu.memory_space<vmem>>, vector<16x128xf32>
      tpu.vector_store %arg10[%c0_27, %c0_28], %45 {strides = array<i32>} : memref<16x128xf32, #tpu.memory_space<vmem>>, vector<16x128xf32>,
    } else {
    }
    %c0 = arith.constant 0 : index
    %c0_1 = arith.constant 0 : index
    %3 = vector.load %arg10[%c0, %c0_1] : memref<16x128xf32, #tpu.memory_space<vmem>>, vector<16x128xf32>
    %c0_2 = arith.constant 0 : index
    %c0_3 = arith.constant 0 : index
    %4 = vector.load %arg7[%c0_2, %c0_3] : memref<128x256xf32, #tpu.memory_space<vmem>>, vector<128x256xf32>
    %cst = arith.constant dense<0.000000e+00> : vector<16x256xf32>
    %5 = tpu.matmul %3, %4, %cst {dimension_numbers = #tpu.dot_dimension_numbers<[1], [0], [0], [1], [0, 0, 1, 1], [], []>} : vector<16x128xf32>, vector<128x256xf32>, vector<16x256xf32> -> vector<16x256xf32>
    %c0_4 = arith.constant 0 : index
    %c0_5 = arith.constant 0 : index
    %6 = vector.load %arg8[%c0_4, %c0_5] : memref<1x256xf32, #tpu.memory_space<vmem>>, vector<1x256xf32>
    %7 = vector.broadcast %6 : vector<1x256xf32> to vector<16x256xf32>
    %8 = arith.addf %5, %7 : vector<16x256xf32>
    %c0_6 = arith.constant 0 : index
    %c0_7 = arith.constant 0 : index
    %9 = vector.load %arg9[%c0_6, %c0_7] : memref<16x256xf32, #tpu.memory_space<vmem>>, vector<16x256xf32>
    tpu.vector_store %arg9[%c0_6, %c0_7], %8 {strides = array<i32>} : memref<16x256xf32, #tpu.memory_space<vmem>>, vector<16x256xf32>,
    return
  }
  func.func @transform_0(%arg0: i32, %arg1: i32) -> (i32, i32) {
    %c0_i32 = arith.constant 0 : i32
    %c0_i32_0 = arith.constant 0 : i32
    return %arg0, %c0_i32 : i32, i32
  }
  func.func @transform_1(%arg0: i32, %arg1: i32) -> (i32, i32) {
    %c0_i32 = arith.constant 0 : i32
    %c0_i32_0 = arith.constant 0 : i32
    %c0_i32_1 = arith.constant 0 : i32
    return %c0_i32, %c0_i32_0 : i32, i32
  }
  func.func @transform_2(%arg0: i32, %arg1: i32) -> (i32, i32) {
    %c0_i32 = arith.constant 0 : i32
    %c0_i32_0 = arith.constant 0 : i32
    %c0_i32_1 = arith.constant 0 : i32
    return %c0_i32, %c0_i32_0 : i32, i32
  }
  func.func @transform_3(%arg0: i32, %arg1: i32) -> (i32, i32) {
    %c0_i32 = arith.constant 0 : i32
    %c0_i32_0 = arith.constant 0 : i32
    %c0_i32_1 = arith.constant 0 : i32
    return %c0_i32, %c0_i32_0 : i32, i32
  }
  func.func @transform_4(%arg0: i32, %arg1: i32) -> (i32, i32) {
    %c0_i32 = arith.constant 0 : i32
    %c0_i32_0 = arith.constant 0 : i32
    %c0_i32_1 = arith.constant 0 : i32
    return %c0_i32, %c0_i32_0 : i32, i32
  }
  func.func @transform_5(%arg0: i32, %arg1: i32) -> (i32, i32) {
    %c0_i32 = arith.constant 0 : i32
    %c0_i32_0 = arith.constant 0 : i32
    return %c0_i32, %arg1 : i32, i32
  }
  func.func @transform_6(%arg0: i32, %arg1: i32) -> (i32, i32) {
    %c0_i32 = arith.constant 0 : i32
    %c0_i32_0 = arith.constant 0 : i32
    return %c0_i32, %arg1 : i32, i32
  }
  func.func @transform_7(%arg0: i32, %arg1: i32) -> (i32, i32) {
    %c0_i32 = arith.constant 0 : i32
    return %arg0, %arg1 : i32, i32
  }
}

</mosaic_0001>

<llo_original>
// kernel: tpu_custom_call.1
$region0: #{tpu_custom_call.1}
  #allocation0 [shape = 'u32[]', space=smem, size = 0x4, offset = 0x4, fixed_abs, tag = 'smem constant byte address 0x4 - core index']
  #allocation1 [shape = 'u32[72,128]{1,0:T(1,128)}', space=vmem, size = 0x9000, scoped, tag = 'internal scratch']
  #allocation2 [shape = 'f32[16,128]{1,0:T(8,128)}', space=vmem, size = 0x2000, scoped, tag = 'scratch operand']
  %s0 = inlined_call_operand.hbm [shape: f32[16,128], index: 0, kind: input, shape index: {}]
  %s1 = inlined_call_operand.hbm [shape: f32[128,128], index: 1, kind: input, shape index: {}]
  %s2 = inlined_call_operand.vmem [shape: f32[1,128], index: 2, kind: input, shape index: {}]
  %s3 = inlined_call_operand.hbm [shape: f32[1,128], index: 3, kind: input, shape index: {}]
  %s4 = inlined_call_operand.hbm [shape: f32[1,128], index: 4, kind: input, shape index: {}]
  %s5 = inlined_call_operand.hbm [shape: f32[128,256], index: 5, kind: input, shape index: {}]
  %s6 = inlined_call_operand.vmem [shape: f32[1,256], index: 6, kind: input, shape index: {}]
  %s7 = inlined_call_operand.hbm [shape: f32[16,256], index: 7, kind: output, shape index: {}]
  %s8 = sld [smem:[#allocation0]]
  $region62: #{tpu_custom_call.1} parent=0
    _
  %s10 = ssub.s32 1, %s8
  %s11 = scalar_select 0, %s10, %s8
  $region1: #{tpu_custom_call.1} parent=0
    #allocation3 [shape = 'u8[8192]{0}', space=vmem, size = 0x2000, scoped, tag = 'input window, operand 0, single buffered']
    #allocation4 [shape = 's32[1]{0}', space=sflag, size = 0x4, scoped, tag = 'scoped memory for tpu_custom_call.1']
    #allocation5 [shape = 's32[1]{0}', space=sflag, size = 0x4, scoped, tag = 'scoped memory for tpu_custom_call.1']
    #allocation6 [shape = 'u8[65536]{0}', space=vmem, size = 0x10000, scoped, tag = 'input window, operand 1, single buffered']
    #allocation7 [shape = 's32[1]{0}', space=sflag, size = 0x4, scoped, tag = 'scoped memory for tpu_custom_call.1']
    #allocation8 [shape = 'u8[512]{0}', space=vmem, size = 0x400, scoped, tag = 'input window, operand 3, single buffered']
    #allocation9 [shape = 'u8[512]{0}', space=vmem, size = 0x400, scoped, tag = 'input window, operand 4, single buffered']
    #allocation10 [shape = 's32[1]{0}', space=sflag, size = 0x4, scoped, tag = 'scoped memory for tpu_custom_call.1']
    #allocation11 [shape = 'u8[131072]{0}', space=vmem, size = 0x20000, scoped, tag = 'input window, operand 5, single buffered']
    #allocation12 [shape = 'u8[16384]{0}', space=vmem, size = 0x4000, scoped, tag = 'output window, operand 0, single buffered']
    %12 = vsyncpa [#allocation4], 0
    %13 = vsyncpa [#allocation7], 0
    %14 = vsyncpa [#allocation10], 0
    %15 = vsyncpa [#allocation5], 0
    // Predicated region
    $region2: #{tpu_custom_call.1} parent=1 // pred_check
      _
    $region3: #{tpu_custom_call.1} parent=1 // pred_check_branch
      %17 = sbr.rel (0) target = $region5
    $region4: #{tpu_custom_call.1} parent=1 // pred_region
      %19 = vsyncadd [#allocation4], 0
      %s20 = sshll.u32 %s0, 4
      %s21 = int_to_ptr.hbm [resolvable:$true] %s20
      %s22 = sshll.u32 [#allocation3], 4
      %s23 = int_to_ptr.vmem [resolvable:$true] %s22
      %28 = dma.hbm_to_vmem [thread:$0]  %s21, 256, %s23, [#allocation4], 128, 128, 8
    $region5: #{tpu_custom_call.1} parent=1 // pred_fallthru
      _
    // Predicated region
    $region6: #{tpu_custom_call.1} parent=1 // pred_check
      _
    $region7: #{tpu_custom_call.1} parent=1 // pred_check_branch
      %30 = sbr.rel (0) target = $region9
    $region8: #{tpu_custom_call.1} parent=1 // pred_region
      %32 = vsyncadd [#allocation7], 0
      %s33 = sshll.u32 %s1, 4
      %s34 = int_to_ptr.hbm [resolvable:$true] %s33
      %s35 = sshll.u32 [#allocation6], 4
      %s36 = int_to_ptr.vmem [resolvable:$true] %s35
      %41 = dma.hbm_to_vmem [thread:$0]  %s34, 2048, %s36, [#allocation7], 128, 128, 8
    $region9: #{tpu_custom_call.1} parent=1 // pred_fallthru
      _
    // Predicated region
    $region10: #{tpu_custom_call.1} parent=1 // pred_check
      _
    $region11: #{tpu_custom_call.1} parent=1 // pred_check_branch
      %43 = sbr.rel (0) target = $region13
    $region12: #{tpu_custom_call.1} parent=1 // pred_region
      _
    $region13: #{tpu_custom_call.1} parent=1 // pred_fallthru
      _
    // Predicated region
    $region14: #{tpu_custom_call.1} parent=1 // pred_check
      _
    $region15: #{tpu_custom_call.1} parent=1 // pred_check_branch
      %45 = sbr.rel (0) target = $region17
    $region16: #{tpu_custom_call.1} parent=1 // pred_region
      %47 = vsyncadd [#allocation7], 0
      %s49 = sshll.u32 %s3, 4
      %s50 = int_to_ptr.hbm [resolvable:$true] %s49
      %s51 = sshll.u32 [#allocation8], 4
      %s52 = int_to_ptr.vmem [resolvable:$true] %s51
      %54 = dma.hbm_to_vmem [thread:$0]  %s50, 16, %s52, [#allocation7]
    $region17: #{tpu_custom_call.1} parent=1 // pred_fallthru
      _
    // Predicated region
    $region18: #{tpu_custom_call.1} parent=1 // pred_check
      _
    $region19: #{tpu_custom_call.1} parent=1 // pred_check_branch
      %56 = sbr.rel (0) target = $region21
    $region20: #{tpu_custom_call.1} parent=1 // pred_region
      %58 = vsyncadd [#allocation10], 0
      %s60 = sshll.u32 %s4, 4
      %s61 = int_to_ptr.hbm [resolvable:$true] %s60
      %s62 = sshll.u32 [#allocation9], 4
      %s63 = int_to_ptr.vmem [resolvable:$true] %s62
      %65 = dma.hbm_to_vmem [thread:$0]  %s61, 16, %s63, [#allocation10]
    $region21: #{tpu_custom_call.1} parent=1 // pred_fallthru
      _
    // Predicated region
    $region22: #{tpu_custom_call.1} parent=1 // pred_check
      _
    $region23: #{tpu_custom_call.1} parent=1 // pred_check_branch
      %67 = sbr.rel (0) target = $region25
    $region24: #{tpu_custom_call.1} parent=1 // pred_region
      %69 = vsyncadd [#allocation10], 0
      %s70 = sshll.u32 %s5, 4
      %s71 = int_to_ptr.hbm [resolvable:$true] %s70
      %s72 = sshll.u32 [#allocation11], 4
      %s73 = int_to_ptr.vmem [resolvable:$true] %s72
      %78 = dma.hbm_to_vmem [thread:$0]  %s71, 4096, %s73, [#allocation10], 256, 256, 16
    $region25: #{tpu_custom_call.1} parent=1 // pred_fallthru
      _
    // Predicated region
    $region26: #{tpu_custom_call.1} parent=1 // pred_check
      _
    $region27: #{tpu_custom_call.1} parent=1 // pred_check_branch
      %80 = sbr.rel (0) target = $region29
    $region28: #{tpu_custom_call.1} parent=1 // pred_region
      _
    $region29: #{tpu_custom_call.1} parent=1 // pred_fallthru
      _
    // Predicated region
    $region30: #{tpu_custom_call.1} parent=1 // pred_check
      _
    $region31: #{tpu_custom_call.1} parent=1 // pred_check_branch
      %82 = sbr.rel (0) target = $region33
    $region32: #{tpu_custom_call.1} parent=1 // pred_region
      %84 = dma.done [#allocation4], 256
    $region33: #{tpu_custom_call.1} parent=1 // pred_fallthru
      _
    // Predicated region
    $region34: #{tpu_custom_call.1} parent=1 // pred_check
      _
    $region35: #{tpu_custom_call.1} parent=1 // pred_check_branch
      %86 = sbr.rel (0) target = $region37
    $region36: #{tpu_custom_call.1} parent=1 // pred_region
      %88 = dma.done [#allocation7], 2048
    $region37: #{tpu_custom_call.1} parent=1 // pred_fallthru
      _
    // Predicated region
    $region38: #{tpu_custom_call.1} parent=1 // pred_check
      _
    $region39: #{tpu_custom_call.1} parent=1 // pred_check_branch
      %90 = sbr.rel (0) target = $region41
    $region40: #{tpu_custom_call.1} parent=1 // pred_region
      %92 = dma.done [#allocation7], 16
    $region41: #{tpu_custom_call.1} parent=1 // pred_fallthru
      _
    // Predicated region
    $region42: #{tpu_custom_call.1} parent=1 // pred_check
      _
    $region43: #{tpu_custom_call.1} parent=1 // pred_check_branch
      %94 = sbr.rel (0) target = $region45
    $region44: #{tpu_custom_call.1} parent=1 // pred_region
      %96 = dma.done [#allocation10], 16
    $region45: #{tpu_custom_call.1} parent=1 // pred_fallthru
      _
    // Predicated region
    $region46: #{tpu_custom_call.1} parent=1 // pred_check
      _
    $region47: #{tpu_custom_call.1} parent=1 // pred_check_branch
      %98 = sbr.rel (0) target = $region49
    $region48: #{tpu_custom_call.1} parent=1 // pred_region
      %100 = dma.done [#allocation10], 4096
    $region49: #{tpu_custom_call.1} parent=1 // pred_fallthru
      _
    %p101 = scmp.eq.s32.totalorder 0, 0
    // Predicated region
    $region50: #{tpu_custom_call.1} parent=1 // pred_check
      %p102 = pneg %p101
    $region51: #{tpu_custom_call.1} parent=1 // pred_check_branch
      %104 = sbr.rel (%p102) target = $region53
    $region52: #{tpu_custom_call.1} parent=1 // pred_region
      %v105 = vld [vmem:[#allocation3] sm:$0xff]
      %v106 = vld [vmem:[#allocation3 + $0x8] sm:$0xff]
      %v107 = vld [vmem:[#allocation6] sm:$0xff]
      %v108 = vld [vmem:[#allocation6 + $0x8] sm:$0xff]
      %v109 = vld [vmem:[#allocation6 + $0x10] sm:$0xff]
      %v110 = vld [vmem:[#allocation6 + $0x18] sm:$0xff]
      %v111 = vld [vmem:[#allocation6 + $0x20] sm:$0xff]
      %v112 = vld [vmem:[#allocation6 + $0x28] sm:$0xff]
      %v113 = vld [vmem:[#allocation6 + $0x30] sm:$0xff]
      %v114 = vld [vmem:[#allocation6 + $0x38] sm:$0xff]
      %v115 = vld [vmem:[#allocation6 + $0x40] sm:$0xff]
      %v116 = vld [vmem:[#allocation6 + $0x48] sm:$0xff]
      %v117 = vld [vmem:[#allocation6 + $0x50] sm:$0xff]
      %v118 = vld [vmem:[#allocation6 + $0x58] sm:$0xff]
      %v119 = vld [vmem:[#allocation6 + $0x60] sm:$0xff]
      %v120 = vld [vmem:[#allocation6 + $0x68] sm:$0xff]
      %v121 = vld [vmem:[#allocation6 + $0x70] sm:$0xff]
      %v122 = vld [vmem:[#allocation6 + $0x78] sm:$0xff]
      %v123 = vld [vmem:[%s2] sm:$0x1]
      %v125 = vperm.slane %v123, 0
      %127 = vmatpush.msra.mxu0 %v122
      %128 = vmatpush.msra.mxu0 %v121
      %129 = vmatpush.msra.mxu0 %v120
      %130 = vmatpush.msra.mxu0 %v119
      %131 = vmatpush.msra.mxu0 %v118
      %132 = vmatpush.msra.mxu0 %v117
      %133 = vmatpush.msra.mxu0 %v116
      %134 = vmatpush.msra.mxu0 %v115
      %135 = vmatpush.msra.mxu0 %v114
      %136 = vmatpush.msra.mxu0 %v113
      %137 = vmatpush.msra.mxu0 %v112
      %138 = vmatpush.msra.mxu0 %v111
      %139 = vmatpush.msra.mxu0 %v110
      %140 = vmatpush.msra.mxu0 %v109
      %141 = vmatpush.msra.mxu0 %v108
      %142 = vmatpush.msra.mxu0 %v107
      %143 = vmatmul.f32.gmra.mxu0 %v105
      %v144 = vpop.f32.mrf.mxu0
      %v145 = vadd.f32 %v125, %v144
      %146 = vmatmul.f32.gmra.mxu0 %v106
      %v147 = vpop.f32.mrf.mxu0
      %v148 = vadd.f32 %v125, %v147
      %149 = vdwg.mxu0
      %v150 = vmul.f32 %v145, 0.5
      %v151 = vmul.f32 %v148, 0.5
      %v152 = vmul.f32 %v145, 0.70710677
      %v153 = vmul.f32 %v148, 0.70710677
      %v154 = vmul.f32 %v152, %v152
      %v155 = vmin.f32 16.0, %v154
      %v156 = vmul.f32 %v155, 2.1237322e-06
      %v157 = vadd.f32 %v156, 0.00028619796
      %v158 = vmul.f32 %v155, %v157
      %v159 = vadd.f32 %v158, 0.0036580483
      %v160 = vmul.f32 %v155, %v159
      %v161 = vadd.f32 %v160, 0.05243302
      %v162 = vmul.f32 %v155, %v161
      %v163 = vadd.f32 %v162, 0.18741608
      %v164 = vmul.f32 %v155, %v163
      %v165 = vadd.f32 %v164, 1.1283791
      %v166 = vmul.f32 %v152, %v165
      %v167 = vmul.f32 %v155, 3.8918573e-05
      %v168 = vadd.f32 %v167, 0.001143296
      %v169 = vmul.f32 %v155, %v168
      %v170 = vadd.f32 %v169, 0.014752088
      %v171 = vmul.f32 %v155, %v170
      %v172 = vadd.f32 %v171, 0.112945676
      %v173 = vmul.f32 %v155, %v172
      %v174 = vadd.f32 %v173, 0.4994258
      %v175 = vmul.f32 %v155, %v174
      %v176 = vadd.f32 %v175, 1.0
      %v177 = vrcp.pop %v176
      %v178 = vmul.f32 %v176, %v177
      %v179 = vsub.f32 1.0, %v178
      %v180 = vmul.f32 %v177, %v179
      %v181 = vadd.f32 %v177, %v180
      %vm182 = vweird.f32 %v176
      %vm183 = vweird.f32 %v177
      %vm184 = vmor %vm182, %vm183
      %v185 = vsel %vm184, %v177, %v181
      %v186 = vand.u32 2147483647, %v176
      %vm187 = vcmp.eq.f32.partialorder %v186, 8.507059e+37
      %v188 = vand.u32 %v176, 2147483648
      %v189 = vor.u32 1.1754944e-38, %v188
      %v190 = vsel %vm187, %v189, %v185
      %v191 = vmul.f32 %v166, %v190
      %v192 = vmin.f32 %v191, 1.0
      %v193 = vmax.f32 %v192, -1.0
      %v194 = vmul.f32 %v153, %v153
      %v195 = vmin.f32 16.0, %v194
      %v196 = vmul.f32 %v195, 2.1237322e-06
      %v197 = vadd.f32 %v196, 0.00028619796
      %v198 = vmul.f32 %v195, %v197
      %v199 = vadd.f32 %v198, 0.0036580483
      %v200 = vmul.f32 %v195, %v199
      %v201 = vadd.f32 %v200, 0.05243302
      %v202 = vmul.f32 %v195, %v201
      %v203 = vadd.f32 %v202, 0.18741608
      %v204 = vmul.f32 %v195, %v203
      %v205 = vadd.f32 %v204, 1.1283791
      %v206 = vmul.f32 %v153, %v205
      %v207 = vmul.f32 %v195, 3.8918573e-05
      %v208 = vadd.f32 %v207, 0.001143296
      %v209 = vmul.f32 %v195, %v208
      %v210 = vadd.f32 %v209, 0.014752088
      %v211 = vmul.f32 %v195, %v210
      %v212 = vadd.f32 %v211, 0.112945676
      %v213 = vmul.f32 %v195, %v212
      %v214 = vadd.f32 %v213, 0.4994258
      %v215 = vmul.f32 %v195, %v214
      %v216 = vadd.f32 %v215, 1.0
      %v217 = vrcp.pop %v216
      %v218 = vmul.f32 %v216, %v217
      %v219 = vsub.f32 1.0, %v218
      %v220 = vmul.f32 %v217, %v219
      %v221 = vadd.f32 %v217, %v220
      %vm222 = vweird.f32 %v216
      %vm223 = vweird.f32 %v217
      %vm224 = vmor %vm222, %vm223
      %v225 = vsel %vm224, %v217, %v221
      %v226 = vand.u32 2147483647, %v216
      %vm227 = vcmp.eq.f32.partialorder %v226, 8.507059e+37
      %v228 = vand.u32 %v216, 2147483648
      %v229 = vor.u32 1.1754944e-38, %v228
      %v230 = vsel %vm227, %v229, %v225
      %v231 = vmul.f32 %v206, %v230
      %v232 = vmin.f32 %v231, 1.0
      %v233 = vmax.f32 %v232, -1.0
      %v234 = vadd.f32 %v193, 1.0
      %v235 = vadd.f32 %v233, 1.0
      %v236 = vmul.f32 %v150, %v234
      %v237 = vmul.f32 %v151, %v235
      %238 = vadd.xlane.f32.xlu0 %v236
      %v239 = vpop.xlane.xlu0 %238
      %240 = vadd.xlane.f32.xlu0 %v237
      %v241 = vpop.xlane.xlu0 %240
      %v242 = vrcp.pop 128.0
      %v243 = vmul.f32 128.0, %v242
      %v244 = vsub.f32 1.0, %v243
      %v245 = vmul.f32 %v242, %v244
      %v246 = vadd.f32 %v242, %v245
      %vm247 = vweird.f32 %v242
      %v248 = vsel %vm247, %v242, %v246
      %v249 = vmul.f32 %v239, %v248
      %v250 = vmul.f32 %v241, %v248
      %v251 = vsub.f32 %v236, %v249
      %v252 = vsub.f32 %v237, %v250
      %v253 = vmul.f32 %v251, %v251
      %v254 = vmul.f32 %v252, %v252
      %255 = vadd.xlane.f32.xlu0 %v253
      %v256 = vpop.xlane.xlu0 %255
      %257 = vadd.xlane.f32.xlu0 %v254
      %v258 = vpop.xlane.xlu0 %257
      %v259 = vmul.f32 %v256, %v248
      %v260 = vmul.f32 %v258, %v248
      %v261 = vadd.f32 %v259, 1e-12
      %v262 = vadd.f32 %v260, 1e-12
      %v263 = vrsqrt.pop %v261
      %v264 = vmul.f32 %v263, %v261
      %v265 = vmul.f32 %v264, %v263
      %v266 = vmul.f32 0.5, %v265
      %v267 = vsub.f32 1.5, %v266
      %v268 = vmul.f32 %v263, %v267
      %vm269 = vweird.f32 %v261
      %vm270 = vweird.f32 %v263
      %vm271 = vmor %vm269, %vm270
      %v272 = vsel %vm271, %v263, %v268
      %v273 = vrsqrt.pop %v262
      %v274 = vmul.f32 %v273, %v262
      %v275 = vmul.f32 %v274, %v273
      %v276 = vmul.f32 0.5, %v275
      %v277 = vsub.f32 1.5, %v276
      %v278 = vmul.f32 %v273, %v277
      %vm279 = vweird.f32 %v262
      %vm280 = vweird.f32 %v273
      %vm281 = vmor %vm279, %vm280
      %v282 = vsel %vm281, %v273, %v278
      %v283 = vmul.f32 %v251, %v272
      %v284 = vmul.f32 %v252, %v282
      %v285 = vld [vmem:[#allocation8] sm:$0x1]
      %v287 = vperm.slane %v285, 0
      %v289 = vmul.f32 %v283, %v287
      %v290 = vmul.f32 %v284, %v287
      %v291 = vld [vmem:[#allocation9] sm:$0x1]
      %v293 = vperm.slane %v291, 0
      %v295 = vadd.f32 %v289, %v293
      %v296 = vadd.f32 %v290, %v293
      %297 = vst [vmem:[#allocation2] sm:$0xff] %v295
      %298 = vst [vmem:[#allocation2 + $0x8] sm:$0xff] %v296
    $region53: #{tpu_custom_call.1} parent=1 // pred_fallthru
      _
    %v299 = vld [vmem:[#allocation2] sm:$0xff]
    %v300 = vld [vmem:[#allocation2 + $0x8] sm:$0xff]
    %v301 = vld [vmem:[#allocation11] sm:$0xff]
    %v302 = vld [vmem:[#allocation11 + $0x8] sm:$0xff]
    %v303 = vld [vmem:[#allocation11 + $0x10] sm:$0xff]
    %v304 = vld [vmem:[#allocation11 + $0x18] sm:$0xff]
    %v305 = vld [vmem:[#allocation11 + $0x20] sm:$0xff]
    %v306 = vld [vmem:[#allocation11 + $0x28] sm:$0xff]
    %v307 = vld [vmem:[#allocation11 + $0x30] sm:$0xff]
    %v308 = vld [vmem:[#allocation11 + $0x38] sm:$0xff]
    %v309 = vld [vmem:[#allocation11 + $0x40] sm:$0xff]
    %v310 = vld [vmem:[#allocation11 + $0x48] sm:$0xff]
    %v311 = vld [vmem:[#allocation11 + $0x50] sm:$0xff]
    %v312 = vld [vmem:[#allocation11 + $0x58] sm:$0xff]
    %v313 = vld [vmem:[#allocation11 + $0x60] sm:$0xff]
    %v314 = vld [vmem:[#allocation11 + $0x68] sm:$0xff]
    %v315 = vld [vmem:[#allocation11 + $0x70] sm:$0xff]
    %v316 = vld [vmem:[#allocation11 + $0x78] sm:$0xff]
    %v317 = vld [vmem:[#allocation11 + $0x80] sm:$0xff]
    %v318 = vld [vmem:[#allocation11 + $0x88] sm:$0xff]
    %v319 = vld [vmem:[#allocation11 + $0x90] sm:$0xff]
    %v320 = vld [vmem:[#allocation11 + $0x98] sm:$0xff]
    %v321 = vld [vmem:[#allocation11 + $0xa0] sm:$0xff]
    %v322 = vld [vmem:[#allocation11 + $0xa8] sm:$0xff]
    %v323 = vld [vmem:[#allocation11 + $0xb0] sm:$0xff]
    %v324 = vld [vmem:[#allocation11 + $0xb8] sm:$0xff]
    %v325 = vld [vmem:[#allocation11 + $0xc0] sm:$0xff]
    %v326 = vld [vmem:[#allocation11 + $0xc8] sm:$0xff]
    %v327 = vld [vmem:[#allocation11 + $0xd0] sm:$0xff]
    %v328 = vld [vmem:[#allocation11 + $0xd8] sm:$0xff]
    %v329 = vld [vmem:[#allocation11 + $0xe0] sm:$0xff]
    %v330 = vld [vmem:[#allocation11 + $0xe8] sm:$0xff]
    %v331 = vld [vmem:[#allocation11 + $0xf0] sm:$0xff]
    %v332 = vld [vmem:[#allocation11 + $0xf8] sm:$0xff]
    %v333 = vld [vmem:[%s6] sm:$0x3]
    %v335 = vperm.slane %v333, 0
    %v336 = vperm.slane %v333, 1
    %339 = vmatpush.msra.mxu0 %v331
    %340 = vmatpush.msra.mxu0 %v329
    %341 = vmatpush.msra.mxu0 %v327
    %342 = vmatpush.msra.mxu0 %v325
    %343 = vmatpush.msra.mxu0 %v323
    %344 = vmatpush.msra.mxu0 %v321
    %345 = vmatpush.msra.mxu0 %v319
    %346 = vmatpush.msra.mxu0 %v317
    %347 = vmatpush.msra.mxu0 %v315
    %348 = vmatpush.msra.mxu0 %v313
    %349 = vmatpush.msra.mxu0 %v311
    %350 = vmatpush.msra.mxu0 %v309
    %351 = vmatpush.msra.mxu0 %v307
    %352 = vmatpush.msra.mxu0 %v305
    %353 = vmatpush.msra.mxu0 %v303
    %354 = vmatpush.msra.mxu0 %v301
    %355 = vmatmul.f32.gmra.mxu0 %v299
    %v356 = vpop.f32.mrf.mxu0
    %v357 = vadd.f32 %v335, %v356
    %358 = vmatmul.f32.gmra.mxu0 %v300
    %v359 = vpop.f32.mrf.mxu0
    %v360 = vadd.f32 %v335, %v359
    %361 = vdwg.mxu0
    %362 = vmatpush.msra.mxu0 %v332
    %363 = vmatpush.msra.mxu0 %v330
    %364 = vmatpush.msra.mxu0 %v328
    %365 = vmatpush.msra.mxu0 %v326
    %366 = vmatpush.msra.mxu0 %v324
    %367 = vmatpush.msra.mxu0 %v322
    %368 = vmatpush.msra.mxu0 %v320
    %369 = vmatpush.msra.mxu0 %v318
    %370 = vmatpush.msra.mxu0 %v316
    %371 = vmatpush.msra.mxu0 %v314
    %372 = vmatpush.msra.mxu0 %v312
    %373 = vmatpush.msra.mxu0 %v310
    %374 = vmatpush.msra.mxu0 %v308
    %375 = vmatpush.msra.mxu0 %v306
    %376 = vmatpush.msra.mxu0 %v304
    %377 = vmatpush.msra.mxu0 %v302
    %378 = vmatmul.f32.gmra.mxu0 %v299
    %v379 = vpop.f32.mrf.mxu0
    %v380 = vadd.f32 %v336, %v379
    %381 = vmatmul.f32.gmra.mxu0 %v300
    %v382 = vpop.f32.mrf.mxu0
    %v383 = vadd.f32 %v336, %v382
    %384 = vdwg.mxu0
    %385 = vst [vmem:[#allocation12] sm:$0xff] %v357
    %386 = vst [vmem:[#allocation12 + $0x8] sm:$0xff] %v380
    %387 = vst [vmem:[#allocation12 + $0x10] sm:$0xff] %v360
    %388 = vst [vmem:[#allocation12 + $0x18] sm:$0xff] %v383
    // Predicated region
    $region54: #{tpu_custom_call.1} parent=1 // pred_check
      _
    $region55: #{tpu_custom_call.1} parent=1 // pred_check_branch
      %390 = sbr.rel (0) target = $region57
    $region56: #{tpu_custom_call.1} parent=1 // pred_region
      %392 = vsyncadd [#allocation5], 0
      %s393 = sshll.u32 [#allocation12], 4
      %s394 = int_to_ptr.vmem [resolvable:$true] %s393
      %s395 = sshll.u32 %s7, 4
      %s396 = int_to_ptr.hbm [resolvable:$true] %s395
      %401 = dma.vmem_to_hbm [thread:$0]  %s394, 512, %s396, [#allocation5], 256, 256, 16
    $region57: #{tpu_custom_call.1} parent=1 // pred_fallthru
      _
    // Predicated region
    $region58: #{tpu_custom_call.1} parent=1 // pred_check
      _
    $region59: #{tpu_custom_call.1} parent=1 // pred_check_branch
      %403 = sbr.rel (0) target = $region61
    $region60: #{tpu_custom_call.1} parent=1 // pred_region
      %405 = dma.done [#allocation5], 512
    $region61: #{tpu_custom_call.1} parent=1 // pred_fallthru
      _
    %406 = vsyncpa [#allocation4], 1
    %407 = vsyncpa [#allocation7], 1
    %408 = vsyncpa [#allocation10], 1
    %409 = vsyncpa [#allocation5], 1

</llo_original>
